<compile_context>
chip_gen: v6e
topology: v6e:2x2x1
jax: 0.10.0
libtpu: 0.0.40
codegen_flags: <defaults>
</compile_context>

<pallas_src>
import jax
import jax.numpy as jnp
from jax.experimental import pallas as pl
from jax.experimental.pallas import tpu as pltpu

LANE = 128


def _round_up(x, m):
    return ((x + m - 1) // m) * m


def category_rnn_kernel(
    class_ref,    # (B, NC)      conditioning class vector (constant over time)
    x_ref,        # (T*B, I)     whole input sequence, time-major, flattened
    h0_ref,       # (B, OHp)     initial hidden placed at columns [O, O+H)
    w_cls_ref,    # (NC, OHp)    fused [W_i2o | W_i2h] rows for the class vec
    w_in_ref,     # (I, OHp)     fused rows for the input
    w_carry_ref,  # (OHp, OHp)   fused hidden rows embedded at rows [O, O+H)
    b1_ref,       # (1, OHp)     fused bias [b_i2o | b_i2h | 0]
    w_o2o_ref,    # (OHp, Op)    output2output weight, zero padded
    b_o2o_ref,    # (1, Op)
    out_ref,      # (T*B, Op)    final output (columns >= O are zero padding)
    hfin_ref,     # (B, OHp)     final stage-1 row (hidden at cols [O, O+H))
    s1_scratch,   # VMEM (T, B, OHp)  stage-1 slab [out_tmp | hidden | pad]
):
    T, B, OHp = s1_scratch.shape

    # ---- prologue (runs once): hoisted, batched projections ----------------
    # Class fold: class_vec is constant over time, so its projection becomes
    # part of the effective bias.
    b_eff = (
        jnp.dot(class_ref[...], w_cls_ref[...], preferred_element_type=jnp.float32)
        + b1_ref[...]
    )                                                               # (B, OHp)
    # Input projection for every timestep in one MXU-friendly matmul.
    xproj = jnp.dot(
        x_ref[...], w_in_ref[...], preferred_element_type=jnp.float32
    )                                                               # (T*B, OHp)
    s1_scratch[...] = xproj.reshape(T, B, OHp) + b_eff[None, :, :]

    # ---- serial recurrence: only h_t -> h_{t+1} stays in the loop ----------
    # carry = full padded stage-1 row; w_carry is zero outside the hidden-row
    # block, so carry @ w_carry == hidden_new @ W_i2h (no slicing needed).
    w_carry = w_carry_ref[...]

    def step(t, carry):
        stage1 = s1_scratch[t] + jnp.dot(
            carry, w_carry, preferred_element_type=jnp.float32
        )
        s1_scratch[t] = stage1
        return stage1

    final = jax.lax.fori_loop(0, T, step, h0_ref[...], unroll=True)
    hfin_ref[...] = final

    # ---- epilogue (runs once): batched output2output matmul ----------------
    out = (
        jnp.dot(
            s1_scratch[...].reshape(T * B, OHp),
            w_o2o_ref[...],
            preferred_element_type=jnp.float32,
        )
        + b_o2o_ref[...]
    )
    # TODO(synk): nn.Dropout(0.1) in training mode would need pltpu.prng_seed /
    # pltpu.prng_random_bits masking with 1/(1-p) scaling; eval mode is identity.
    out_ref[...] = out.astype(out_ref.dtype)


def category_rnn_sequence(class_vec, inputs, hidden0, kparams):
    """Runs T recurrent steps of the categoryRNN inside one pallas_call.

    inputs: (T, B, input_shape). Returns (outputs (T, B, O), final hidden (B, H)).
    """
    T, B, I = inputs.shape
    NC = class_vec.shape[1]
    H = hidden0.shape[1]
    O = kparams["output_shape"]
    OHp = kparams["w_carry"].shape[0]
    Op = kparams["w_o2o"].shape[1]

    x_flat = inputs.reshape(T * B, I).astype(jnp.float32)
    # Initial carry: hidden placed at the fused hidden columns [O, O+H).
    h0p = jnp.pad(hidden0.astype(jnp.float32), ((0, 0), (O, OHp - O - H)))

    def full(shape):
        return pl.BlockSpec(shape, lambda i: (0,) * len(shape))

    out_flat, s1_final = pl.pallas_call(
        category_rnn_kernel,
        out_shape=(
            jax.ShapeDtypeStruct((T * B, Op), jnp.float32),
            jax.ShapeDtypeStruct((B, OHp), jnp.float32),
        ),
        grid=(1,),
        in_specs=[
            full((B, NC)),
            full((T * B, I)),
            full((B, OHp)),
            full((NC, OHp)),
            full((I, OHp)),
            full((OHp, OHp)),
            full((1, OHp)),
            full((OHp, Op)),
            full((1, Op)),
        ],
        out_specs=(full((T * B, Op)), full((B, OHp))),
        scratch_shapes=[pltpu.VMEM((T, B, OHp), jnp.float32)],
        compiler_params=pltpu.CompilerParams(dimension_semantics=("arbitrary",)),
    )(
        class_vec.astype(jnp.float32), x_flat, h0p,
        kparams["w_cls"], kparams["w_in"], kparams["w_carry"],
        kparams["b1"], kparams["w_o2o"], kparams["b_o2o"],
    )

    outputs = out_flat.reshape(T, B, Op)[:, :, :O]
    hidden_final = s1_final[:, O:O + H]
    return outputs, hidden_final


def category_rnn_forward(class_vec, inp, hidden, kparams):
    """Single-step forward, identical semantics to the PyTorch module.forward."""
    outputs, hidden_new = category_rnn_sequence(class_vec, inp[None], hidden, kparams)
    return outputs[0], hidden_new


def init_params(key, input_shape, hidden_shape, output_shape, n_classes):
    """PyTorch nn.Linear-style init; weights stored (in_features, out_features)."""
    C = n_classes + input_shape + hidden_shape
    OH = output_shape + hidden_shape

    def linear(k, fan_in, fan_out):
        kw, kb = jax.random.split(k)
        bound = 1.0 / float(fan_in) ** 0.5
        w = jax.random.uniform(kw, (fan_in, fan_out), jnp.float32, -bound, bound)
        b = jax.random.uniform(kb, (1, fan_out), jnp.float32, -bound, bound)
        return w, b

    k1, k2, k3 = jax.random.split(key, 3)
    w_i2h, b_i2h = linear(k1, C, hidden_shape)
    w_i2o, b_i2o = linear(k2, C, output_shape)
    w_o2o, b_o2o = linear(k3, OH, output_shape)
    return {
        "w_i2h": w_i2h, "b_i2h": b_i2h,
        "w_i2o": w_i2o, "b_i2o": b_i2o,
        "w_o2o": w_o2o, "b_o2o": b_o2o,
    }


def make_kernel_params(raw, input_shape, hidden_shape, output_shape, n_classes):
    """Fuse / pad the PyTorch-layout params into the kernel's lane-dense layout.

    Stage-1 columns are [output_tmp (O) | hidden (H) | zero pad] padded to a
    multiple of 128 lanes.  W_i2h is embedded into a (OHp, OHp) carry matrix
    whose only non-zero rows sit at the hidden columns, so the kernel can feed
    the whole padded stage-1 row back without slicing or concatenation.
    """
    NC, I, H, O = n_classes, input_shape, hidden_shape, output_shape
    OH = O + H
    OHp = _round_up(OH, LANE)
    Op = _round_up(O, LANE)

    w1 = jnp.concatenate([raw["w_i2o"], raw["w_i2h"]], axis=1)   # (C, OH)
    b1 = jnp.concatenate([raw["b_i2o"], raw["b_i2h"]], axis=1)   # (1, OH)
    w1p = jnp.pad(w1, ((0, 0), (0, OHp - OH)))
    b1p = jnp.pad(b1, ((0, 0), (0, OHp - OH)))

    w_cls = w1p[:NC]
    w_in = w1p[NC:NC + I]
    w_hid = w1p[NC + I:]                                          # (H, OHp)
    w_carry = jnp.zeros((OHp, OHp), jnp.float32).at[O:O + H, :].set(w_hid)

    w_o2o = jnp.pad(raw["w_o2o"], ((0, OHp - OH), (0, Op - O)))
    b_o2o = jnp.pad(raw["b_o2o"], ((0, 0), (0, Op - O)))

    return {
        "w_cls": w_cls, "w_in": w_in, "w_carry": w_carry, "b1": b1p,
        "w_o2o": w_o2o, "b_o2o": b_o2o,
        "output_shape": O, "hidden_shape": H,
    }


def reference_forward(class_vec, inp, hidden, raw):
    """Pure-JAX reference of the PyTorch forward (dropout = eval identity)."""
    comb = jnp.concatenate([class_vec, inp, hidden], axis=1)
    hidden_new = comb @ raw["w_i2h"] + raw["b_i2h"]
    output_tmp = comb @ raw["w_i2o"] + raw["b_i2o"]
    out_comb = jnp.concatenate([output_tmp, hidden_new], axis=1)
    output = out_comb @ raw["w_o2o"] + raw["b_o2o"]
    return output, hidden_new


if __name__ == "__main__":
    # Small demo shapes.  For real workloads raise batch toward 128 (v5e) /
    # 256 (v6e, v7x) and use bf16 weights/activations on v6e/v7x to fill the
    # MXU; for multiple independent sequences on v7x, shard them over the two
    # TensorCores with a leading "parallel" grid axis.
    batch = 8
    n_classes = 4
    input_shape = 8
    hidden_shape = 32
    output_shape = 16
    seq_len = 8

    key = jax.random.PRNGKey(0)
    kp, kc, ki, kh, ks = jax.random.split(key, 5)

    raw = init_params(kp, input_shape, hidden_shape, output_shape, n_classes)
    kparams = make_kernel_params(raw, input_shape, hidden_shape, output_shape, n_classes)

    class_vec = jax.random.normal(kc, (batch, n_classes), jnp.float32)
    inp = jax.random.normal(ki, (batch, input_shape), jnp.float32)
    hidden = jax.random.normal(kh, (batch, hidden_shape), jnp.float32)
    inputs_seq = jax.random.normal(ks, (seq_len, batch, input_shape), jnp.float32)

    # --- single step: exact module.forward semantics ---
    out, hid = category_rnn_forward(class_vec, inp, hidden, kparams)
    out, hid = jax.block_until_ready((out, hid))
    ref_out, ref_hid = reference_forward(class_vec, inp, hidden, raw)
    assert out.shape == (batch, output_shape)
    assert hid.shape == (batch, hidden_shape)
    assert jnp.allclose(out, ref_out, atol=1e-4, rtol=1e-4)
    assert jnp.allclose(hid, ref_hid, atol=1e-4, rtol=1e-4)

    # --- full sequence: whole recurrence in a single pallas_call ---
    outs, hid_T = category_rnn_sequence(class_vec, inputs_seq, hidden, kparams)
    outs, hid_T = jax.block_until_ready((outs, hid_T))
    h_ref = hidden
    for t in range(seq_len):
        ref_o, h_ref = reference_forward(class_vec, inputs_seq[t], h_ref, raw)
        assert jnp.allclose(outs[t], ref_o, atol=1e-4, rtol=1e-4)
    assert jnp.allclose(hid_T, h_ref, atol=1e-4, rtol=1e-4)

    print("KERNEL_OK")
</pallas_src>

<mosaic_0001>
module attributes {stable_mosaic.version = 11 : i64} {
  func.func @category_rnn_kernel(%arg0: i32, %arg1: memref<8x4xf32, #tpu.memory_space<vmem>>, %arg2: memref<8x8xf32, #tpu.memory_space<vmem>>, %arg3: memref<8x128xf32, #tpu.memory_space<vmem>>, %arg4: memref<4x128xf32, #tpu.memory_space<vmem>>, %arg5: memref<8x128xf32, #tpu.memory_space<vmem>>, %arg6: memref<128x128xf32, #tpu.memory_space<vmem>>, %arg7: memref<1x128xf32, #tpu.memory_space<vmem>>, %arg8: memref<128x128xf32, #tpu.memory_space<vmem>>, %arg9: memref<1x128xf32, #tpu.memory_space<vmem>>, %arg10: memref<8x128xf32, #tpu.memory_space<vmem>>, %arg11: memref<8x128xf32, #tpu.memory_space<vmem>>, %arg12: memref<1x8x128xf32, #tpu.memory_space<vmem>>) attributes {dimension_semantics = [#tpu.dimension_semantics<arbitrary>], iteration_bounds = array<i64: 1>, scalar_prefetch = 0 : i64, scratch_operands = 1 : i64, tpu.core_type = #tpu.core_type<tc>, window_params = [{pipeline_mode = #tpu.pipeline_mode<synchronous>, transform_indices = @transform_0, window_bounds = array<i64: 8, 4>}, {pipeline_mode = #tpu.pipeline_mode<synchronous>, transform_indices = @transform_1, window_bounds = array<i64: 8, 8>}, {pipeline_mode = #tpu.pipeline_mode<synchronous>, transform_indices = @transform_2, window_bounds = array<i64: 8, 128>}, {pipeline_mode = #tpu.pipeline_mode<synchronous>, transform_indices = @transform_3, window_bounds = array<i64: 4, 128>}, {pipeline_mode = #tpu.pipeline_mode<synchronous>, transform_indices = @transform_4, window_bounds = array<i64: 8, 128>}, {pipeline_mode = #tpu.pipeline_mode<synchronous>, transform_indices = @transform_5, window_bounds = array<i64: 128, 128>}, {pipeline_mode = #tpu.pipeline_mode<synchronous>, transform_indices = @transform_6, window_bounds = array<i64: 1, 128>}, {pipeline_mode = #tpu.pipeline_mode<synchronous>, transform_indices = @transform_7, window_bounds = array<i64: 128, 128>}, {pipeline_mode = #tpu.pipeline_mode<synchronous>, transform_indices = @transform_8, window_bounds = array<i64: 1, 128>}, {pipeline_mode = #tpu.pipeline_mode<synchronous>, transform_indices = @transform_9, window_bounds = array<i64: 8, 128>}, {pipeline_mode = #tpu.pipeline_mode<synchronous>, transform_indices = @transform_10, window_bounds = array<i64: 8, 128>}]} {
    %c0 = arith.constant 0 : index
    %c0_0 = arith.constant 0 : index
    %0 = vector.load %arg1[%c0, %c0_0] : memref<8x4xf32, #tpu.memory_space<vmem>>, vector<8x4xf32>
    %c0_1 = arith.constant 0 : index
    %c0_2 = arith.constant 0 : index
    %1 = vector.load %arg4[%c0_1, %c0_2] : memref<4x128xf32, #tpu.memory_space<vmem>>, vector<4x128xf32>
    %cst = arith.constant dense<0.000000e+00> : vector<8x128xf32>
    %2 = tpu.matmul %0, %1, %cst {dimension_numbers = #tpu.dot_dimension_numbers<[1], [0], [0], [1], [0, 0, 1, 1], [], []>} : vector<8x4xf32>, vector<4x128xf32>, vector<8x128xf32> -> vector<8x128xf32>
    %c0_3 = arith.constant 0 : index
    %c0_4 = arith.constant 0 : index
    %3 = vector.load %arg7[%c0_3, %c0_4] : memref<1x128xf32, #tpu.memory_space<vmem>>, vector<1x128xf32>
    %4 = vector.broadcast %3 : vector<1x128xf32> to vector<8x128xf32>
    %5 = arith.addf %2, %4 : vector<8x128xf32>
    %c0_5 = arith.constant 0 : index
    %c0_6 = arith.constant 0 : index
    %6 = vector.load %arg2[%c0_5, %c0_6] : memref<8x8xf32, #tpu.memory_space<vmem>>, vector<8x8xf32>
    %c0_7 = arith.constant 0 : index
    %c0_8 = arith.constant 0 : index
    %7 = vector.load %arg5[%c0_7, %c0_8] : memref<8x128xf32, #tpu.memory_space<vmem>>, vector<8x128xf32>
    %cst_9 = arith.constant dense<0.000000e+00> : vector<8x128xf32>
    %8 = tpu.matmul %6, %7, %cst_9 {dimension_numbers = #tpu.dot_dimension_numbers<[1], [0], [0], [1], [0, 0, 1, 1], [], []>} : vector<8x8xf32>, vector<8x128xf32>, vector<8x128xf32> -> vector<8x128xf32>
    %9 = vector.shape_cast %8 : vector<8x128xf32> to vector<1x8x128xf32>
    %10 = vector.shape_cast %5 : vector<8x128xf32> to vector<1x8x128xf32>
    %11 = arith.addf %9, %10 : vector<1x8x128xf32>
    %c0_10 = arith.constant 0 : index
    %c0_11 = arith.constant 0 : index
    %c0_12 = arith.constant 0 : index
    %12 = vector.load %arg12[%c0_10, %c0_11, %c0_12] : memref<1x8x128xf32, #tpu.memory_space<vmem>>, vector<1x8x128xf32>
    tpu.vector_store %arg12[%c0_10, %c0_11, %c0_12], %11 {strides = array<i32>} : memref<1x8x128xf32, #tpu.memory_space<vmem>>, vector<1x8x128xf32>,
    %c0_13 = arith.constant 0 : index
    %c0_14 = arith.constant 0 : index
    %13 = vector.load %arg6[%c0_13, %c0_14] : memref<128x128xf32, #tpu.memory_space<vmem>>, vector<128x128xf32>
    %c0_15 = arith.constant 0 : index
    %c0_16 = arith.constant 0 : index
    %14 = vector.load %arg3[%c0_15, %c0_16] : memref<8x128xf32, #tpu.memory_space<vmem>>, vector<8x128xf32>
    %c0_i32 = arith.constant 0 : i32
    %15 = arith.index_cast %c0_i32 : i32 to index
    %c0_17 = arith.constant 0 : index
    %c0_18 = arith.constant 0 : index
    %16 = vector.load %arg12[%15, %c0_17, %c0_18] : memref<1x8x128xf32, #tpu.memory_space<vmem>>, vector<1x8x128xf32>
    %17 = vector.shape_cast %16 : vector<1x8x128xf32> to vector<8x128xf32>
    %cst_19 = arith.constant dense<0.000000e+00> : vector<8x128xf32>
    %18 = tpu.matmul %14, %13, %cst_19 {dimension_numbers = #tpu.dot_dimension_numbers<[1], [0], [0], [1], [0, 0, 1, 1], [], []>} : vector<8x128xf32>, vector<128x128xf32>, vector<8x128xf32> -> vector<8x128xf32>
    %19 = arith.addf %17, %18 : vector<8x128xf32>
    %20 = arith.index_cast %c0_i32 : i32 to index
    %c0_20 = arith.constant 0 : index
    %c0_21 = arith.constant 0 : index
    %21 = vector.load %arg12[%20, %c0_20, %c0_21] : memref<1x8x128xf32, #tpu.memory_space<vmem>>, vector<1x8x128xf32>
    %22 = vector.shape_cast %21 : vector<1x8x128xf32> to vector<8x128xf32>
    %23 = vector.shape_cast %19 : vector<8x128xf32> to vector<1x8x128xf32>
    tpu.vector_store %arg12[%20, %c0_20, %c0_21], %23 {strides = array<i32>} : memref<1x8x128xf32, #tpu.memory_space<vmem>>, vector<1x8x128xf32>,
    %c1_i32 = arith.constant 1 : i32
    %c0_22 = arith.constant 0 : index
    %c0_23 = arith.constant 0 : index
    %24 = vector.load %arg11[%c0_22, %c0_23] : memref<8x128xf32, #tpu.memory_space<vmem>>, vector<8x128xf32>
    tpu.vector_store %arg11[%c0_22, %c0_23], %19 {strides = array<i32>} : memref<8x128xf32, #tpu.memory_space<vmem>>, vector<8x128xf32>,
    %c0_24 = arith.constant 0 : index
    %c0_25 = arith.constant 0 : index
    %c0_26 = arith.constant 0 : index
    %25 = vector.load %arg12[%c0_24, %c0_25, %c0_26] : memref<1x8x128xf32, #tpu.memory_space<vmem>>, vector<1x8x128xf32>
    %26 = vector.shape_cast %25 : vector<1x8x128xf32> to vector<8x128xf32>
    %c0_27 = arith.constant 0 : index
    %c0_28 = arith.constant 0 : index
    %27 = vector.load %arg8[%c0_27, %c0_28] : memref<128x128xf32, #tpu.memory_space<vmem>>, vector<128x128xf32>
    %cst_29 = arith.constant dense<0.000000e+00> : vector<8x128xf32>
    %28 = tpu.matmul %26, %27, %cst_29 {dimension_numbers = #tpu.dot_dimension_numbers<[1], [0], [0], [1], [0, 0, 1, 1], [], []>} : vector<8x128xf32>, vector<128x128xf32>, vector<8x128xf32> -> vector<8x128xf32>
    %c0_30 = arith.constant 0 : index
    %c0_31 = arith.constant 0 : index
    %29 = vector.load %arg9[%c0_30, %c0_31] : memref<1x128xf32, #tpu.memory_space<vmem>>, vector<1x128xf32>
    %30 = vector.broadcast %29 : vector<1x128xf32> to vector<8x128xf32>
    %31 = arith.addf %28, %30 : vector<8x128xf32>
    %c0_32 = arith.constant 0 : index
    %c0_33 = arith.constant 0 : index
    %32 = vector.load %arg10[%c0_32, %c0_33] : memref<8x128xf32, #tpu.memory_space<vmem>>, vector<8x128xf32>
    tpu.vector_store %arg10[%c0_32, %c0_33], %31 {strides = array<i32>} : memref<8x128xf32, #tpu.memory_space<vmem>>, vector<8x128xf32>,
    return
  }
  func.func @transform_0(%arg0: i32) -> (i32, i32) {
    %c0_i32 = arith.constant 0 : i32
    %c0_i32_0 = arith.constant 0 : i32
    %c0_i32_1 = arith.constant 0 : i32
    return %c0_i32, %c0_i32_0 : i32, i32
  }
  func.func @transform_1(%arg0: i32) -> (i32, i32) {
    %c0_i32 = arith.constant 0 : i32
    %c0_i32_0 = arith.constant 0 : i32
    %c0_i32_1 = arith.constant 0 : i32
    return %c0_i32, %c0_i32_0 : i32, i32
  }
  func.func @transform_2(%arg0: i32) -> (i32, i32) {
    %c0_i32 = arith.constant 0 : i32
    %c0_i32_0 = arith.constant 0 : i32
    %c0_i32_1 = arith.constant 0 : i32
    return %c0_i32, %c0_i32_0 : i32, i32
  }
  func.func @transform_3(%arg0: i32) -> (i32, i32) {
    %c0_i32 = arith.constant 0 : i32
    %c0_i32_0 = arith.constant 0 : i32
    %c0_i32_1 = arith.constant 0 : i32
    return %c0_i32, %c0_i32_0 : i32, i32
  }
  func.func @transform_4(%arg0: i32) -> (i32, i32) {
    %c0_i32 = arith.constant 0 : i32
    %c0_i32_0 = arith.constant 0 : i32
    %c0_i32_1 = arith.constant 0 : i32
    return %c0_i32, %c0_i32_0 : i32, i32
  }
  func.func @transform_5(%arg0: i32) -> (i32, i32) {
    %c0_i32 = arith.constant 0 : i32
    %c0_i32_0 = arith.constant 0 : i32
    %c0_i32_1 = arith.constant 0 : i32
    return %c0_i32, %c0_i32_0 : i32, i32
  }
  func.func @transform_6(%arg0: i32) -> (i32, i32) {
    %c0_i32 = arith.constant 0 : i32
    %c0_i32_0 = arith.constant 0 : i32
    %c0_i32_1 = arith.constant 0 : i32
    return %c0_i32, %c0_i32_0 : i32, i32
  }
  func.func @transform_7(%arg0: i32) -> (i32, i32) {
    %c0_i32 = arith.constant 0 : i32
    %c0_i32_0 = arith.constant 0 : i32
    %c0_i32_1 = arith.constant 0 : i32
    return %c0_i32, %c0_i32_0 : i32, i32
  }
  func.func @transform_8(%arg0: i32) -> (i32, i32) {
    %c0_i32 = arith.constant 0 : i32
    %c0_i32_0 = arith.constant 0 : i32
    %c0_i32_1 = arith.constant 0 : i32
    return %c0_i32, %c0_i32_0 : i32, i32
  }
  func.func @transform_9(%arg0: i32) -> (i32, i32) {
    %c0_i32 = arith.constant 0 : i32
    %c0_i32_0 = arith.constant 0 : i32
    %c0_i32_1 = arith.constant 0 : i32
    return %c0_i32, %c0_i32_0 : i32, i32
  }
  func.func @transform_10(%arg0: i32) -> (i32, i32) {
    %c0_i32 = arith.constant 0 : i32
    %c0_i32_0 = arith.constant 0 : i32
    %c0_i32_1 = arith.constant 0 : i32
    return %c0_i32, %c0_i32_0 : i32, i32
  }
}

</mosaic_0001>

<llo_original>
// kernel: tpu_custom_call.1
$region0: #{tpu_custom_call.1}
  #allocation0 [shape = 'u32[]', space=smem, size = 0x4, offset = 0x4, fixed_abs, tag = 'smem constant byte address 0x4 - core index']
  #allocation1 [shape = 'u32[144,128]{1,0:T(1,128)}', space=vmem, size = 0x12000, scoped, tag = 'internal scratch']
  #allocation2 [shape = 'f32[1,8,128]{2,1,0:T(8,128)}', space=vmem, size = 0x1000, scoped, tag = 'scratch operand']
  %s0 = inlined_call_operand.vmem [shape: f32[8,4], index: 0, kind: input, shape index: {}]
  %s1 = inlined_call_operand.vmem [shape: f32[8,8], index: 1, kind: input, shape index: {}]
  %s2 = inlined_call_operand.hbm [shape: f32[8,128], index: 2, kind: input, shape index: {}]
  %s3 = inlined_call_operand.hbm [shape: f32[4,128], index: 3, kind: input, shape index: {}]
  %s4 = inlined_call_operand.vmem [shape: f32[8,128], index: 4, kind: input, shape index: {}]
  %s5 = inlined_call_operand.hbm [shape: f32[128,128], index: 5, kind: input, shape index: {}]
  %s6 = inlined_call_operand.vmem [shape: f32[1,128], index: 6, kind: input, shape index: {}]
  %s7 = inlined_call_operand.hbm [shape: f32[128,128], index: 7, kind: input, shape index: {}]
  %s8 = inlined_call_operand.vmem [shape: f32[1,128], index: 8, kind: input, shape index: {}]
  %s9 = inlined_call_operand.hbm [shape: f32[8,128], index: 9, kind: output, shape index: {0}]
  %s10 = inlined_call_operand.hbm [shape: f32[8,128], index: 10, kind: output, shape index: {1}]
  %11 = xla_tuple %s9, %s10
  %s12 = sld [smem:[#allocation0]]
  $region70: #{tpu_custom_call.1} parent=0
    _
  %s14 = ssub.s32 1, %s12
  %s15 = scalar_select 0, %s14, %s12
  $region1: #{tpu_custom_call.1} parent=0
    #allocation3 [shape = 'u8[4096]{0}', space=vmem, size = 0x1000, scoped, tag = 'input window, operand 2, single buffered']
    #allocation4 [shape = 's32[1]{0}', space=sflag, size = 0x4, scoped, tag = 'scoped memory for tpu_custom_call.1']
    #allocation5 [shape = 's32[1]{0}', space=sflag, size = 0x4, scoped, tag = 'scoped memory for tpu_custom_call.1']
    #allocation6 [shape = 'u8[2048]{0}', space=vmem, size = 0x800, scoped, tag = 'input window, operand 3, single buffered']
    #allocation7 [shape = 's32[1]{0}', space=sflag, size = 0x4, scoped, tag = 'scoped memory for tpu_custom_call.1']
    #allocation8 [shape = 'u8[65536]{0}', space=vmem, size = 0x10000, scoped, tag = 'input window, operand 5, single buffered']
    #allocation9 [shape = 'u8[65536]{0}', space=vmem, size = 0x10000, scoped, tag = 'input window, operand 7, single buffered']
    #allocation10 [shape = 's32[1]{0}', space=sflag, size = 0x4, scoped, tag = 'scoped memory for tpu_custom_call.1']
    #allocation11 [shape = 'u8[4096]{0}', space=vmem, size = 0x1000, scoped, tag = 'output window, operand 0, single buffered']
    #allocation12 [shape = 'u8[4096]{0}', space=vmem, size = 0x1000, scoped, tag = 'output window, operand 1, single buffered']
    #allocation13 [shape = 's32[1]{0}', space=sflag, size = 0x4, scoped, tag = 'scoped memory for tpu_custom_call.1']
    %16 = vsyncpa [#allocation4], 0
    %17 = vsyncpa [#allocation7], 0
    %18 = vsyncpa [#allocation10], 0
    %19 = vsyncpa [#allocation5], 0
    %20 = vsyncpa [#allocation13], 0
    // Predicated region
    $region2: #{tpu_custom_call.1} parent=1 // pred_check
      _
    $region3: #{tpu_custom_call.1} parent=1 // pred_check_branch
      %22 = sbr.rel (0) target = $region5
    $region4: #{tpu_custom_call.1} parent=1 // pred_region
      _
    $region5: #{tpu_custom_call.1} parent=1 // pred_fallthru
      _
    // Predicated region
    $region6: #{tpu_custom_call.1} parent=1 // pred_check
      _
    $region7: #{tpu_custom_call.1} parent=1 // pred_check_branch
      %24 = sbr.rel (0) target = $region9
    $region8: #{tpu_custom_call.1} parent=1 // pred_region
      _
    $region9: #{tpu_custom_call.1} parent=1 // pred_fallthru
      _
    // Predicated region
    $region10: #{tpu_custom_call.1} parent=1 // pred_check
      _
    $region11: #{tpu_custom_call.1} parent=1 // pred_check_branch
      %26 = sbr.rel (0) target = $region13
    $region12: #{tpu_custom_call.1} parent=1 // pred_region
      %s28 = ssub.s32 128, 128
      %29 = vsyncadd [#allocation4], %s28
      %s31 = sshll.u32 [#allocation3], 4
      %s32 = int_to_ptr.vmem [resolvable:$true] %s31
      %34 = dma.hbm_to_vmem [thread:$0]  %s2, 128, %s32, [#allocation4]
    $region13: #{tpu_custom_call.1} parent=1 // pred_fallthru
      _
    // Predicated region
    $region14: #{tpu_custom_call.1} parent=1 // pred_check
      _
    $region15: #{tpu_custom_call.1} parent=1 // pred_check_branch
      %36 = sbr.rel (0) target = $region17
    $region16: #{tpu_custom_call.1} parent=1 // pred_region
      %s38 = ssub.s32 64, 64
      %39 = vsyncadd [#allocation7], %s38
      %s41 = sshll.u32 [#allocation6], 4
      %s42 = int_to_ptr.vmem [resolvable:$true] %s41
      %44 = dma.hbm_to_vmem [thread:$0]  %s3, 64, %s42, [#allocation7]
    $region17: #{tpu_custom_call.1} parent=1 // pred_fallthru
      _
    // Predicated region
    $region18: #{tpu_custom_call.1} parent=1 // pred_check
      _
    $region19: #{tpu_custom_call.1} parent=1 // pred_check_branch
      %46 = sbr.rel (0) target = $region21
    $region20: #{tpu_custom_call.1} parent=1 // pred_region
      _
    $region21: #{tpu_custom_call.1} parent=1 // pred_fallthru
      _
    // Predicated region
    $region22: #{tpu_custom_call.1} parent=1 // pred_check
      _
    $region23: #{tpu_custom_call.1} parent=1 // pred_check_branch
      %48 = sbr.rel (0) target = $region25
    $region24: #{tpu_custom_call.1} parent=1 // pred_region
      %s50 = ssub.s32 2048, 2048
      %51 = vsyncadd [#allocation7], %s50
      %s52 = sshll.u32 [#allocation8], 4
      %s53 = int_to_ptr.vmem [resolvable:$true] %s52
      %58 = dma.hbm_to_vmem [thread:$0]  %s5, 2048, %s53, [#allocation7], 128, 128, 8
    $region25: #{tpu_custom_call.1} parent=1 // pred_fallthru
      _
    // Predicated region
    $region26: #{tpu_custom_call.1} parent=1 // pred_check
      _
    $region27: #{tpu_custom_call.1} parent=1 // pred_check_branch
      %60 = sbr.rel (0) target = $region29
    $region28: #{tpu_custom_call.1} parent=1 // pred_region
      _
    $region29: #{tpu_custom_call.1} parent=1 // pred_fallthru
      _
    // Predicated region
    $region30: #{tpu_custom_call.1} parent=1 // pred_check
      _
    $region31: #{tpu_custom_call.1} parent=1 // pred_check_branch
      %62 = sbr.rel (0) target = $region33
    $region32: #{tpu_custom_call.1} parent=1 // pred_region
      %s64 = ssub.s32 2048, 2048
      %65 = vsyncadd [#allocation10], %s64
      %s66 = sshll.u32 [#allocation9], 4
      %s67 = int_to_ptr.vmem [resolvable:$true] %s66
      %72 = dma.hbm_to_vmem [thread:$0]  %s7, 2048, %s67, [#allocation10], 128, 128, 8
    $region33: #{tpu_custom_call.1} parent=1 // pred_fallthru
      _
    // Predicated region
    $region34: #{tpu_custom_call.1} parent=1 // pred_check
      _
    $region35: #{tpu_custom_call.1} parent=1 // pred_check_branch
      %74 = sbr.rel (0) target = $region37
    $region36: #{tpu_custom_call.1} parent=1 // pred_region
      _
    $region37: #{tpu_custom_call.1} parent=1 // pred_fallthru
      _
    // Predicated region
    $region38: #{tpu_custom_call.1} parent=1 // pred_check
      _
    $region39: #{tpu_custom_call.1} parent=1 // pred_check_branch
      %76 = sbr.rel (0) target = $region41
    $region40: #{tpu_custom_call.1} parent=1 // pred_region
      %77 = dma.done [#allocation4], 128
    $region41: #{tpu_custom_call.1} parent=1 // pred_fallthru
      _
    // Predicated region
    $region42: #{tpu_custom_call.1} parent=1 // pred_check
      _
    $region43: #{tpu_custom_call.1} parent=1 // pred_check_branch
      %79 = sbr.rel (0) target = $region45
    $region44: #{tpu_custom_call.1} parent=1 // pred_region
      %80 = dma.done [#allocation7], 64
    $region45: #{tpu_custom_call.1} parent=1 // pred_fallthru
      _
    // Predicated region
    $region46: #{tpu_custom_call.1} parent=1 // pred_check
      _
    $region47: #{tpu_custom_call.1} parent=1 // pred_check_branch
      %82 = sbr.rel (0) target = $region49
    $region48: #{tpu_custom_call.1} parent=1 // pred_region
      %83 = dma.done [#allocation7], 2048
    $region49: #{tpu_custom_call.1} parent=1 // pred_fallthru
      _
    // Predicated region
    $region50: #{tpu_custom_call.1} parent=1 // pred_check
      _
    $region51: #{tpu_custom_call.1} parent=1 // pred_check_branch
      %85 = sbr.rel (0) target = $region53
    $region52: #{tpu_custom_call.1} parent=1 // pred_region
      %86 = dma.done [#allocation10], 2048
    $region53: #{tpu_custom_call.1} parent=1 // pred_fallthru
      _
    %v87 = vld [vmem:[%s0] sm:$0xff]
    %v88 = vld [vmem:[#allocation6] sm:$0xf]
    %v89 = vld [vmem:[%s6] sm:$0x1]
    %v91 = vlaneseq
    %v92 = vshrl.u32 %v91, 7
    %v93 = vsub.s32 0, %v92
    %v94 = vrot.slane %v89, %v93
    %vm96 = vcmask 31744
    %v98 = vsel %vm96, %v87, 0
    %vm100 = vcmask 1043456
    %v102 = vsel %vm100, %v88, 0
    %104 = vmatprep.subr.mxu0 0.0
    %105 = vmatpush1.msra.mxu0 0.0
    %106 = vmatprep.subr.mxu0 0.0
    %107 = vmatpush1.msra.mxu0 0.0
    %108 = vmatprep.subr.mxu0 0.0
    %109 = vmatpush1.msra.mxu0 0.0
    %110 = vmatprep.subr.mxu0 0.0
    %111 = vmatpush1.msra.mxu0 0.0
    %112 = vmatprep.subr.mxu0 0.0
    %113 = vmatpush1.msra.mxu0 0.0
    %114 = vmatprep.subr.mxu0 0.0
    %115 = vmatpush1.msra.mxu0 0.0
    %116 = vmatprep.subr.mxu0 0.0
    %117 = vmatpush1.msra.mxu0 0.0
    %118 = vmatprep.subr.mxu0 0.0
    %119 = vmatpush1.msra.mxu0 0.0
    %120 = vmatprep.subr.mxu0 0.0
    %121 = vmatpush1.msra.mxu0 0.0
    %122 = vmatprep.subr.mxu0 0.0
    %123 = vmatpush1.msra.mxu0 0.0
    %124 = vmatprep.subr.mxu0 0.0
    %125 = vmatpush1.msra.mxu0 0.0
    %126 = vmatprep.subr.mxu0 0.0
    %127 = vmatpush1.msra.mxu0 0.0
    %128 = vmatprep.subr.mxu0 0.0
    %129 = vmatpush1.msra.mxu0 0.0
    %130 = vmatprep.subr.mxu0 0.0
    %131 = vmatpush1.msra.mxu0 0.0
    %132 = vmatprep.subr.mxu0 0.0
    %133 = vmatpush1.msra.mxu0 0.0
    %134 = vmatprep.subr.mxu0 0.0
    %135 = vmatpush1.msra.mxu0 %v102
    %136 = vmatprep.subr.mxu0 0.0
    %137 = vmatpush2.msra.mxu0 0.0
    %138 = vmatprep.subr.mxu0 0.0
    %139 = vmatpush2.msra.mxu0 0.0
    %140 = vmatprep.subr.mxu0 0.0
    %141 = vmatpush2.msra.mxu0 0.0
    %142 = vmatprep.subr.mxu0 0.0
    %143 = vmatpush2.msra.mxu0 0.0
    %144 = vmatprep.subr.mxu0 0.0
    %145 = vmatpush2.msra.mxu0 0.0
    %146 = vmatprep.subr.mxu0 0.0
    %147 = vmatpush2.msra.mxu0 0.0
    %148 = vmatprep.subr.mxu0 0.0
    %149 = vmatpush2.msra.mxu0 0.0
    %150 = vmatprep.subr.mxu0 0.0
    %151 = vmatpush2.msra.mxu0 0.0
    %152 = vmatprep.subr.mxu0 0.0
    %153 = vmatpush2.msra.mxu0 0.0
    %154 = vmatprep.subr.mxu0 0.0
    %155 = vmatpush2.msra.mxu0 0.0
    %156 = vmatprep.subr.mxu0 0.0
    %157 = vmatpush2.msra.mxu0 0.0
    %158 = vmatprep.subr.mxu0 0.0
    %159 = vmatpush2.msra.mxu0 0.0
    %160 = vmatprep.subr.mxu0 0.0
    %161 = vmatpush2.msra.mxu0 0.0
    %162 = vmatprep.subr.mxu0 0.0
    %163 = vmatpush2.msra.mxu0 0.0
    %164 = vmatprep.subr.mxu0 0.0
    %165 = vmatpush2.msra.mxu0 0.0
    %166 = vmatprep.subr.mxu0 0.0
    %167 = vmatpush2.msra.mxu0 0.0
    %168 = vmatprep.mubr.f32.mxu0 0.0
    %169 = vmatmul.mubr.f32.gmra.mxu0 %v98
    %v170 = vpop.f32.mrf.mxu0
    %v171 = vadd.f32 %v94, %v170
    %v172 = vpop.f32.mrf.mxu0
    %173 = vdwg.mxu0
    %v174 = vld [vmem:[%s1] sm:$0xff]
    %v175 = vld [vmem:[%s4] sm:$0xff]
    %vm176 = vcmask 64512
    %v178 = vsel %vm176, %v174, 0
    %180 = vmatprep.subr.mxu0 0.0
    %181 = vmatpush1.msra.mxu0 0.0
    %182 = vmatprep.subr.mxu0 0.0
    %183 = vmatpush1.msra.mxu0 0.0
    %184 = vmatprep.subr.mxu0 0.0
    %185 = vmatpush1.msra.mxu0 0.0
    %186 = vmatprep.subr.mxu0 0.0
    %187 = vmatpush1.msra.mxu0 0.0
    %188 = vmatprep.subr.mxu0 0.0
    %189 = vmatpush1.msra.mxu0 0.0
    %190 = vmatprep.subr.mxu0 0.0
    %191 = vmatpush1.msra.mxu0 0.0
    %192 = vmatprep.subr.mxu0 0.0
    %193 = vmatpush1.msra.mxu0 0.0
    %194 = vmatprep.subr.mxu0 0.0
    %195 = vmatpush1.msra.mxu0 0.0
    %196 = vmatprep.subr.mxu0 0.0
    %197 = vmatpush1.msra.mxu0 0.0
    %198 = vmatprep.subr.mxu0 0.0
    %199 = vmatpush1.msra.mxu0 0.0
    %200 = vmatprep.subr.mxu0 0.0
    %201 = vmatpush1.msra.mxu0 0.0
    %202 = vmatprep.subr.mxu0 0.0
    %203 = vmatpush1.msra.mxu0 0.0
    %204 = vmatprep.subr.mxu0 0.0
    %205 = vmatpush1.msra.mxu0 0.0
    %206 = vmatprep.subr.mxu0 0.0
    %207 = vmatpush1.msra.mxu0 0.0
    %208 = vmatprep.subr.mxu0 0.0
    %209 = vmatpush1.msra.mxu0 0.0
    %210 = vmatprep.subr.mxu0 0.0
    %211 = vmatpush1.msra.mxu0 %v175
    %212 = vmatprep.subr.mxu0 0.0
    %213 = vmatpush2.msra.mxu0 0.0
    %214 = vmatprep.subr.mxu0 0.0
    %215 = vmatpush2.msra.mxu0 0.0
    %216 = vmatprep.subr.mxu0 0.0
    %217 = vmatpush2.msra.mxu0 0.0
    %218 = vmatprep.subr.mxu0 0.0
    %219 = vmatpush2.msra.mxu0 0.0
    %220 = vmatprep.subr.mxu0 0.0
    %221 = vmatpush2.msra.mxu0 0.0
    %222 = vmatprep.subr.mxu0 0.0
    %223 = vmatpush2.msra.mxu0 0.0
    %224 = vmatprep.subr.mxu0 0.0
    %225 = vmatpush2.msra.mxu0 0.0
    %226 = vmatprep.subr.mxu0 0.0
    %227 = vmatpush2.msra.mxu0 0.0
    %228 = vmatprep.subr.mxu0 0.0
    %229 = vmatpush2.msra.mxu0 0.0
    %230 = vmatprep.subr.mxu0 0.0
    %231 = vmatpush2.msra.mxu0 0.0
    %232 = vmatprep.subr.mxu0 0.0
    %233 = vmatpush2.msra.mxu0 0.0
    %234 = vmatprep.subr.mxu0 0.0
    %235 = vmatpush2.msra.mxu0 0.0
    %236 = vmatprep.subr.mxu0 0.0
    %237 = vmatpush2.msra.mxu0 0.0
    %238 = vmatprep.subr.mxu0 0.0
    %239 = vmatpush2.msra.mxu0 0.0
    %240 = vmatprep.subr.mxu0 0.0
    %241 = vmatpush2.msra.mxu0 0.0
    %242 = vmatprep.subr.mxu0 0.0
    %243 = vmatpush2.msra.mxu0 0.0
    %244 = vmatprep.mubr.f32.mxu0 0.0
    %245 = vmatmul.mubr.f32.gmra.mxu0 %v178
    %v246 = vpop.f32.mrf.mxu0
    %v247 = vadd.f32 0.0, %v246
    %v248 = vpop.f32.mrf.mxu0
    %249 = vdwg.mxu0
    %v250 = vadd.f32 %v247, %v171
    %251 = vst [vmem:[#allocation2] sm:$0xff] %v250
    %v252 = vld [vmem:[#allocation8] sm:$0xff]
    %v253 = vld [vmem:[#allocation8 + $0x8] sm:$0xff]
    %v254 = vld [vmem:[#allocation8 + $0x10] sm:$0xff]
    %v255 = vld [vmem:[#allocation8 + $0x18] sm:$0xff]
    %v256 = vld [vmem:[#allocation8 + $0x20] sm:$0xff]
    %v257 = vld [vmem:[#allocation8 + $0x28] sm:$0xff]
    %v258 = vld [vmem:[#allocation8 + $0x30] sm:$0xff]
    %v259 = vld [vmem:[#allocation8 + $0x38] sm:$0xff]
    %v260 = vld [vmem:[#allocation8 + $0x40] sm:$0xff]
    %v261 = vld [vmem:[#allocation8 + $0x48] sm:$0xff]
    %v262 = vld [vmem:[#allocation8 + $0x50] sm:$0xff]
    %v263 = vld [vmem:[#allocation8 + $0x58] sm:$0xff]
    %v264 = vld [vmem:[#allocation8 + $0x60] sm:$0xff]
    %v265 = vld [vmem:[#allocation8 + $0x68] sm:$0xff]
    %v266 = vld [vmem:[#allocation8 + $0x70] sm:$0xff]
    %v267 = vld [vmem:[#allocation8 + $0x78] sm:$0xff]
    %v268 = vld [vmem:[#allocation3] sm:$0xff]
    %v269 = vld [vmem:[#allocation2] sm:$0xff]
    %270 = vmatprep.subr.mxu0 0.0
    %271 = vmatpush1.msra.mxu0 %v267
    %272 = vmatprep.subr.mxu0 0.0
    %273 = vmatpush1.msra.mxu0 %v266
    %274 = vmatprep.subr.mxu0 0.0
    %275 = vmatpush1.msra.mxu0 %v265
    %276 = vmatprep.subr.mxu0 0.0
    %277 = vmatpush1.msra.mxu0 %v264
    %278 = vmatprep.subr.mxu0 0.0
    %279 = vmatpush1.msra.mxu0 %v263
    %280 = vmatprep.subr.mxu0 0.0
    %281 = vmatpush1.msra.mxu0 %v262
    %282 = vmatprep.subr.mxu0 0.0
    %283 = vmatpush1.msra.mxu0 %v261
    %284 = vmatprep.subr.mxu0 0.0
    %285 = vmatpush1.msra.mxu0 %v260
    %286 = vmatprep.subr.mxu0 0.0
    %287 = vmatpush1.msra.mxu0 %v259
    %288 = vmatprep.subr.mxu0 0.0
    %289 = vmatpush1.msra.mxu0 %v258
    %290 = vmatprep.subr.mxu0 0.0
    %291 = vmatpush1.msra.mxu0 %v257
    %292 = vmatprep.subr.mxu0 0.0
    %293 = vmatpush1.msra.mxu0 %v256
    %294 = vmatprep.subr.mxu0 0.0
    %295 = vmatpush1.msra.mxu0 %v255
    %296 = vmatprep.subr.mxu0 0.0
    %297 = vmatpush1.msra.mxu0 %v254
    %298 = vmatprep.subr.mxu0 0.0
    %299 = vmatpush1.msra.mxu0 %v253
    %300 = vmatprep.subr.mxu0 0.0
    %301 = vmatpush1.msra.mxu0 %v252
    %302 = vmatprep.subr.mxu0 0.0
    %303 = vmatpush2.msra.mxu0 0.0
    %304 = vmatprep.subr.mxu0 0.0
    %305 = vmatpush2.msra.mxu0 0.0
    %306 = vmatprep.subr.mxu0 0.0
    %307 = vmatpush2.msra.mxu0 0.0
    %308 = vmatprep.subr.mxu0 0.0
    %309 = vmatpush2.msra.mxu0 0.0
    %310 = vmatprep.subr.mxu0 0.0
    %311 = vmatpush2.msra.mxu0 0.0
    %312 = vmatprep.subr.mxu0 0.0
    %313 = vmatpush2.msra.mxu0 0.0
    %314 = vmatprep.subr.mxu0 0.0
    %315 = vmatpush2.msra.mxu0 0.0
    %316 = vmatprep.subr.mxu0 0.0
    %317 = vmatpush2.msra.mxu0 0.0
    %318 = vmatprep.subr.mxu0 0.0
    %319 = vmatpush2.msra.mxu0 0.0
    %320 = vmatprep.subr.mxu0 0.0
    %321 = vmatpush2.msra.mxu0 0.0
    %322 = vmatprep.subr.mxu0 0.0
    %323 = vmatpush2.msra.mxu0 0.0
    %324 = vmatprep.subr.mxu0 0.0
    %325 = vmatpush2.msra.mxu0 0.0
    %326 = vmatprep.subr.mxu0 0.0
    %327 = vmatpush2.msra.mxu0 0.0
    %328 = vmatprep.subr.mxu0 0.0
    %329 = vmatpush2.msra.mxu0 0.0
    %330 = vmatprep.subr.mxu0 0.0
    %331 = vmatpush2.msra.mxu0 0.0
    %332 = vmatprep.subr.mxu0 0.0
    %333 = vmatpush2.msra.mxu0 0.0
    %334 = vmatprep.mubr.f32.mxu0 0.0
    %335 = vmatmul.mubr.f32.gmra.mxu0 %v268
    %v336 = vpop.f32.mrf.mxu0
    %v337 = vadd.f32 0.0, %v336
    %v338 = vpop.f32.mrf.mxu0
    %339 = vdwg.mxu0
    %v340 = vadd.f32 %v269, %v337
    %341 = vst [vmem:[#allocation2] sm:$0xff] %v340
    %342 = vst [vmem:[#allocation12] sm:$0xff] %v340
    %v343 = vld [vmem:[#allocation2] sm:$0xff]
    %v344 = vld [vmem:[#allocation9] sm:$0xff]
    %v345 = vld [vmem:[#allocation9 + $0x8] sm:$0xff]
    %v346 = vld [vmem:[#allocation9 + $0x10] sm:$0xff]
    %v347 = vld [vmem:[#allocation9 + $0x18] sm:$0xff]
    %v348 = vld [vmem:[#allocation9 + $0x20] sm:$0xff]
    %v349 = vld [vmem:[#allocation9 + $0x28] sm:$0xff]
    %v350 = vld [vmem:[#allocation9 + $0x30] sm:$0xff]
    %v351 = vld [vmem:[#allocation9 + $0x38] sm:$0xff]
    %v352 = vld [vmem:[#allocation9 + $0x40] sm:$0xff]
    %v353 = vld [vmem:[#allocation9 + $0x48] sm:$0xff]
    %v354 = vld [vmem:[#allocation9 + $0x50] sm:$0xff]
    %v355 = vld [vmem:[#allocation9 + $0x58] sm:$0xff]
    %v356 = vld [vmem:[#allocation9 + $0x60] sm:$0xff]
    %v357 = vld [vmem:[#allocation9 + $0x68] sm:$0xff]
    %v358 = vld [vmem:[#allocation9 + $0x70] sm:$0xff]
    %v359 = vld [vmem:[#allocation9 + $0x78] sm:$0xff]
    %v360 = vld [vmem:[%s8] sm:$0x1]
    %v362 = vlaneseq
    %v363 = vshrl.u32 %v362, 7
    %v364 = vsub.s32 0, %v363
    %v365 = vrot.slane %v360, %v364
    %367 = vmatprep.subr.mxu0 0.0
    %368 = vmatpush1.msra.mxu0 %v359
    %369 = vmatprep.subr.mxu0 0.0
    %370 = vmatpush1.msra.mxu0 %v358
    %371 = vmatprep.subr.mxu0 0.0
    %372 = vmatpush1.msra.mxu0 %v357
    %373 = vmatprep.subr.mxu0 0.0
    %374 = vmatpush1.msra.mxu0 %v356
    %375 = vmatprep.subr.mxu0 0.0
    %376 = vmatpush1.msra.mxu0 %v355
    %377 = vmatprep.subr.mxu0 0.0
    %378 = vmatpush1.msra.mxu0 %v354
    %379 = vmatprep.subr.mxu0 0.0
    %380 = vmatpush1.msra.mxu0 %v353
    %381 = vmatprep.subr.mxu0 0.0
    %382 = vmatpush1.msra.mxu0 %v352
    %383 = vmatprep.subr.mxu0 0.0
    %384 = vmatpush1.msra.mxu0 %v351
    %385 = vmatprep.subr.mxu0 0.0
    %386 = vmatpush1.msra.mxu0 %v350
    %387 = vmatprep.subr.mxu0 0.0
    %388 = vmatpush1.msra.mxu0 %v349
    %389 = vmatprep.subr.mxu0 0.0
    %390 = vmatpush1.msra.mxu0 %v348
    %391 = vmatprep.subr.mxu0 0.0
    %392 = vmatpush1.msra.mxu0 %v347
    %393 = vmatprep.subr.mxu0 0.0
    %394 = vmatpush1.msra.mxu0 %v346
    %395 = vmatprep.subr.mxu0 0.0
    %396 = vmatpush1.msra.mxu0 %v345
    %397 = vmatprep.subr.mxu0 0.0
    %398 = vmatpush1.msra.mxu0 %v344
    %399 = vmatprep.subr.mxu0 0.0
    %400 = vmatpush2.msra.mxu0 0.0
    %401 = vmatprep.subr.mxu0 0.0
    %402 = vmatpush2.msra.mxu0 0.0
    %403 = vmatprep.subr.mxu0 0.0
    %404 = vmatpush2.msra.mxu0 0.0
    %405 = vmatprep.subr.mxu0 0.0
    %406 = vmatpush2.msra.mxu0 0.0
    %407 = vmatprep.subr.mxu0 0.0
    %408 = vmatpush2.msra.mxu0 0.0
    %409 = vmatprep.subr.mxu0 0.0
    %410 = vmatpush2.msra.mxu0 0.0
    %411 = vmatprep.subr.mxu0 0.0
    %412 = vmatpush2.msra.mxu0 0.0
    %413 = vmatprep.subr.mxu0 0.0
    %414 = vmatpush2.msra.mxu0 0.0
    %415 = vmatprep.subr.mxu0 0.0
    %416 = vmatpush2.msra.mxu0 0.0
    %417 = vmatprep.subr.mxu0 0.0
    %418 = vmatpush2.msra.mxu0 0.0
    %419 = vmatprep.subr.mxu0 0.0
    %420 = vmatpush2.msra.mxu0 0.0
    %421 = vmatprep.subr.mxu0 0.0
    %422 = vmatpush2.msra.mxu0 0.0
    %423 = vmatprep.subr.mxu0 0.0
    %424 = vmatpush2.msra.mxu0 0.0
    %425 = vmatprep.subr.mxu0 0.0
    %426 = vmatpush2.msra.mxu0 0.0
    %427 = vmatprep.subr.mxu0 0.0
    %428 = vmatpush2.msra.mxu0 0.0
    %429 = vmatprep.subr.mxu0 0.0
    %430 = vmatpush2.msra.mxu0 0.0
    %431 = vmatprep.mubr.f32.mxu0 0.0
    %432 = vmatmul.mubr.f32.gmra.mxu0 %v343
    %v433 = vpop.f32.mrf.mxu0
    %v434 = vadd.f32 %v365, %v433
    %v435 = vpop.f32.mrf.mxu0
    %436 = vdwg.mxu0
    %437 = vst [vmem:[#allocation11] sm:$0xff] %v434
    // Predicated region
    $region54: #{tpu_custom_call.1} parent=1 // pred_check
      _
    $region55: #{tpu_custom_call.1} parent=1 // pred_check_branch
      %439 = sbr.rel (0) target = $region57
    $region56: #{tpu_custom_call.1} parent=1 // pred_region
      %s441 = ssub.s32 128, 128
      %442 = vsyncadd [#allocation5], %s441
      %s444 = sshll.u32 [#allocation11], 4
      %s445 = int_to_ptr.vmem [resolvable:$true] %s444
      %447 = dma.vmem_to_hbm [thread:$0]  %s445, 128, %s9, [#allocation5]
    $region57: #{tpu_custom_call.1} parent=1 // pred_fallthru
      _
    // Predicated region
    $region58: #{tpu_custom_call.1} parent=1 // pred_check
      _
    $region59: #{tpu_custom_call.1} parent=1 // pred_check_branch
      %449 = sbr.rel (0) target = $region61
    $region60: #{tpu_custom_call.1} parent=1 // pred_region
      %s451 = ssub.s32 128, 128
      %452 = vsyncadd [#allocation13], %s451
      %s454 = sshll.u32 [#allocation12], 4
      %s455 = int_to_ptr.vmem [resolvable:$true] %s454
      %457 = dma.vmem_to_hbm [thread:$0]  %s455, 128, %s10, [#allocation13]
    $region61: #{tpu_custom_call.1} parent=1 // pred_fallthru
      _
    // Predicated region
    $region62: #{tpu_custom_call.1} parent=1 // pred_check
      _
    $region63: #{tpu_custom_call.1} parent=1 // pred_check_branch
      %459 = sbr.rel (0) target = $region65
    $region64: #{tpu_custom_call.1} parent=1 // pred_region
      %460 = dma.done [#allocation5], 128
    $region65: #{tpu_custom_call.1} parent=1 // pred_fallthru
      _
    // Predicated region
    $region66: #{tpu_custom_call.1} parent=1 // pred_check
      _
    $region67: #{tpu_custom_call.1} parent=1 // pred_check_branch
      %462 = sbr.rel (0) target = $region69
    $region68: #{tpu_custom_call.1} parent=1 // pred_region
      %463 = dma.done [#allocation13], 128
    $region69: #{tpu_custom_call.1} parent=1 // pred_fallthru
      _
    %464 = vsyncpa [#allocation4], 1
    %465 = vsyncpa [#allocation7], 1
    %466 = vsyncpa [#allocation10], 1
    %467 = vsyncpa [#allocation5], 1
    %468 = vsyncpa [#allocation13], 1

</llo_original>
